<compile_context>
chip_gen: v7x
topology: tpu7x:2x2x1
jax: 0.10.0
libtpu: 0.0.40
codegen_flags: <defaults>
</compile_context>

<pallas_src>
import math
from functools import partial

import jax
import jax.numpy as jnp
from jax import lax
from jax.experimental import pallas as pl
from jax.experimental.pallas import tpu as pltpu


def _round_up(x, m):
    return ((x + m - 1) // m) * m


# ----------------------------------------------------------------------------
# Pallas kernel: fused (patches @ W + b) followed by LayerNorm over embed dim
# ----------------------------------------------------------------------------
def _proj_ln_kernel(p_ref, w_ref, pk_ref, o_ref, *, eps, e_true, e_pad):
    # p_ref  : (tm, K_pad)    patch tile (compute dtype, e.g. bf16)
    # w_ref  : (K_pad, E_pad) conv weight, flattened (kh,kw,C)-major, transposed
    # pk_ref : (3, E_pad)     packed [conv_bias; ln_gamma; ln_beta] in f32
    # o_ref  : (tm, E_pad)    normalized embeddings (f32, lane-dense store)
    y = jnp.dot(p_ref[...], w_ref[...], preferred_element_type=jnp.float32)

    pk = pk_ref[...]                       # (3, E_pad) f32
    bias = pk[0:1, :]
    gamma = pk[1:2, :]
    beta = pk[2:3, :]

    y = y + bias                           # padded lanes stay exactly 0

    inv_e = 1.0 / float(e_true)
    # Padded columns of y are exactly zero (zero weight cols + zero bias),
    # so summing over E_pad equals summing over the true E.
    mean = jnp.sum(y, axis=-1, keepdims=True) * inv_e
    centered = y - mean
    if e_pad != e_true:
        lane = lax.broadcasted_iota(jnp.int32, (1, e_pad), 1)
        centered = jnp.where(lane < e_true, centered, 0.0)
    var = jnp.sum(centered * centered, axis=-1, keepdims=True) * inv_e
    inv_std = lax.rsqrt(var + eps)         # EUP slot

    # Fused affine: o = centered * (gamma * inv_std) + beta.
    o_ref[...] = (centered * (gamma * inv_std) + beta).astype(o_ref.dtype)


def _proj_layernorm(patches, w_t, bias, gamma, beta, *, eps=1e-5,
                    compute_dtype=jnp.bfloat16, tm=None):
    """patches: (M, K) f32, w_t: (K, E), bias/gamma/beta: (E,) -> (M, E) f32."""
    M, K = patches.shape
    E = w_t.shape[1]

    K_pad = _round_up(K, 128)              # lane-aligned contraction dim
    E_pad = _round_up(E, 128)              # lane-dense output stores
    if tm is None:
        tm = min(512, _round_up(M, 8))     # big MXU-friendly row tile
    M_pad = _round_up(M, tm)

    # Pad rows/cols of the patch matrix in one pass, then cast for the MXU.
    if (M_pad, K_pad) != (M, K):
        patches = jnp.pad(patches, ((0, M_pad - M), (0, K_pad - K)))
    patches = patches.astype(compute_dtype)

    if (K_pad, E_pad) != (K, E):
        w_t = jnp.pad(w_t, ((0, K_pad - K), (0, E_pad - E)))
    w_t = w_t.astype(compute_dtype)

    def pad_e(v):
        return jnp.pad(v, (0, E_pad - E)) if E_pad != E else v
    packed = jnp.stack([pad_e(bias), pad_e(gamma), pad_e(beta)],
                       axis=0).astype(jnp.float32)       # (3, E_pad)

    grid = (M_pad // tm,)
    itemsize = jnp.dtype(compute_dtype).itemsize
    cost = pl.CostEstimate(
        flops=2 * M_pad * K_pad * E_pad,
        transcendentals=0,
        bytes_accessed=(M_pad * K_pad * itemsize
                        + K_pad * E_pad * itemsize
                        + M_pad * E_pad * 4))

    out = pl.pallas_call(
        partial(_proj_ln_kernel, eps=eps, e_true=E, e_pad=E_pad),
        out_shape=jax.ShapeDtypeStruct((M_pad, E_pad), jnp.float32),
        grid_spec=pltpu.PrefetchScalarGridSpec(
            num_scalar_prefetch=0,
            grid=grid,
            in_specs=[
                pl.BlockSpec((tm, K_pad), lambda i: (i, 0)),     # patch tile
                pl.BlockSpec((K_pad, E_pad), lambda i: (0, 0)),  # full weight
                pl.BlockSpec((3, E_pad), lambda i: (0, 0)),      # bias/gamma/beta
            ],
            out_specs=pl.BlockSpec((tm, E_pad), lambda i: (i, 0)),
        ),
        compiler_params=pltpu.CompilerParams(
            dimension_semantics=("parallel",),
            vmem_limit_bytes=32 * 1024 * 1024),
        cost_estimate=cost,
    )(patches, w_t, packed)
    return out[:M, :E]


# ----------------------------------------------------------------------------
# Glue: im2col (row-major, no big transpose) + wrapper == OverlapPatchEmbed.forward
# ----------------------------------------------------------------------------
def _im2col(x_nchw, kh, kw, stride, ph, pw):
    """(B, C, H, W) -> (B*H_out*W_out, kh*kw*C), K axis in (kh, kw, C) order."""
    B, C, H, W = x_nchw.shape
    H_out = (H + 2 * ph - kh) // stride + 1
    W_out = (W + 2 * pw - kw) // stride + 1
    # Transpose the SMALL input to NHWC once; the blown-up patch matrix is then
    # produced directly in row-major (M, K) layout without another transpose.
    x = jnp.transpose(x_nchw, (0, 2, 3, 1))
    xp = jnp.pad(x, ((0, 0), (ph, ph), (pw, pw), (0, 0)))
    cols = []
    for i in range(kh):
        for j in range(kw):
            cols.append(
                xp[:, i:i + stride * H_out:stride, j:j + stride * W_out:stride, :]
            )                                           # (B, H_out, W_out, C)
    p = jnp.stack(cols, axis=3)                         # (B, Ho, Wo, kh*kw, C)
    p = p.reshape(B * H_out * W_out, kh * kw * C)       # contiguous reshape
    return p, H_out, W_out


def overlap_patch_embed(x, params, *, patch_size=7, stride=4, eps=1e-5,
                        compute_dtype=jnp.bfloat16):
    """Equivalent of OverlapPatchEmbed.forward. x: (B, C, H, W) NCHW."""
    kh = kw = patch_size
    ph, pw = kh // 2, kw // 2
    B, C, H, W = x.shape
    E = params["proj_w"].shape[0]

    patches, H_out, W_out = _im2col(x, kh, kw, stride, ph, pw)   # (B*N, K)
    N = H_out * W_out
    K = kh * kw * C

    # Conv weight (E, C, kh, kw) -> (kh, kw, C, E) -> (K, E): matches im2col K order.
    w_t = jnp.transpose(params["proj_w"], (2, 3, 1, 0)).reshape(K, E)

    out = _proj_layernorm(patches, w_t, params["proj_b"],
                          params["ln_w"], params["ln_b"],
                          eps=eps, compute_dtype=compute_dtype)  # (B*N, E)
    return out.reshape(B, N, E), H_out, W_out


# ----------------------------------------------------------------------------
# Deterministic parameter init (mirrors the module's _init_weights)
# ----------------------------------------------------------------------------
def init_params(key, in_chans, embed_dim, patch_size):
    kh = kw = patch_size
    fan_out = kh * kw * embed_dim
    std = math.sqrt(2.0 / fan_out)
    proj_w = std * jax.random.normal(key, (embed_dim, in_chans, kh, kw),
                                     dtype=jnp.float32)
    return {
        "proj_w": proj_w,
        "proj_b": jnp.zeros((embed_dim,), jnp.float32),
        "ln_w": jnp.ones((embed_dim,), jnp.float32),
        "ln_b": jnp.zeros((embed_dim,), jnp.float32),
    }


# ----------------------------------------------------------------------------
# Pure-JAX reference for validation
# ----------------------------------------------------------------------------
def reference(x, params, *, patch_size=7, stride=4, eps=1e-5):
    kh = kw = patch_size
    ph, pw = kh // 2, kw // 2
    y = lax.conv_general_dilated(
        x, params["proj_w"], window_strides=(stride, stride),
        padding=((ph, ph), (pw, pw)),
        dimension_numbers=("NCHW", "OIHW", "NCHW"))
    y = y + params["proj_b"][None, :, None, None]
    B, E, H, W = y.shape
    y = y.reshape(B, E, H * W).transpose(0, 2, 1)                # (B, N, E)
    mean = jnp.mean(y, axis=-1, keepdims=True)
    var = jnp.mean((y - mean) ** 2, axis=-1, keepdims=True)
    y = (y - mean) * lax.rsqrt(var + eps)
    y = y * params["ln_w"] + params["ln_b"]
    return y, H, W


if __name__ == "__main__":
    B, C, Himg, Wimg = 2, 4, 16, 16
    embed_dim = 32
    patch_size, stride = 7, 4

    key = jax.random.PRNGKey(0)
    k_param, k_x = jax.random.split(key)
    params = init_params(k_param, C, embed_dim, patch_size)
    x = jax.random.normal(k_x, (B, C, Himg, Wimg), dtype=jnp.float32)

    ref, H_ref, W_ref = reference(x, params, patch_size=patch_size, stride=stride)

    # f32 compute path: tight numerical check of the fused kernel math.
    out32, H_out, W_out = overlap_patch_embed(
        x, params, patch_size=patch_size, stride=stride,
        compute_dtype=jnp.float32)
    out32 = jax.block_until_ready(out32)
    assert (H_out, W_out) == (H_ref, W_ref)
    assert out32.shape == ref.shape == (B, H_ref * W_ref, embed_dim)
    assert jnp.allclose(out32, ref, atol=1e-4, rtol=1e-4)

    # bf16 production path (MXU-friendly, f32 accumulation): looser tolerance.
    out16, H2, W2 = overlap_patch_embed(
        x, params, patch_size=patch_size, stride=stride,
        compute_dtype=jnp.bfloat16)
    out16 = jax.block_until_ready(out16)
    assert (H2, W2) == (H_ref, W_ref)
    assert out16.shape == ref.shape
    assert jnp.allclose(out16, ref, atol=5e-2, rtol=5e-2)

    print("KERNEL_OK")
</pallas_src>

<mosaic_0001>
module attributes {stable_mosaic.version = 11 : i64} {
  func.func @_proj_ln_kernel(%arg0: i32, %arg1: memref<32x256xf32, #tpu.memory_space<vmem>>, %arg2: memref<256x128xf32, #tpu.memory_space<vmem>>, %arg3: memref<3x128xf32, #tpu.memory_space<vmem>>, %arg4: memref<32x128xf32, #tpu.memory_space<vmem>>) attributes {dimension_semantics = [#tpu.dimension_semantics<parallel>], iteration_bounds = array<i64: 1>, scalar_prefetch = 0 : i64, scratch_operands = 0 : i64, tpu.core_type = #tpu.core_type<tc>, window_params = [{transform_indices = @transform_0, window_bounds = array<i64: 32, 256>}, {pipeline_mode = #tpu.pipeline_mode<synchronous>, transform_indices = @transform_1, window_bounds = array<i64: 256, 128>}, {pipeline_mode = #tpu.pipeline_mode<synchronous>, transform_indices = @transform_2, window_bounds = array<i64: 3, 128>}, {transform_indices = @transform_3, window_bounds = array<i64: 32, 128>}]} {
    %c0 = arith.constant 0 : index
    %c0_0 = arith.constant 0 : index
    %0 = vector.load %arg1[%c0, %c0_0] : memref<32x256xf32, #tpu.memory_space<vmem>>, vector<32x256xf32>
    %c0_1 = arith.constant 0 : index
    %c0_2 = arith.constant 0 : index
    %1 = vector.load %arg2[%c0_1, %c0_2] : memref<256x128xf32, #tpu.memory_space<vmem>>, vector<256x128xf32>
    %cst = arith.constant dense<0.000000e+00> : vector<32x128xf32>
    %2 = tpu.matmul %0, %1, %cst {dimension_numbers = #tpu.dot_dimension_numbers<[1], [0], [0], [1], [0, 0, 1, 1], [], []>} : vector<32x256xf32>, vector<256x128xf32>, vector<32x128xf32> -> vector<32x128xf32>
    %c0_3 = arith.constant 0 : index
    %c0_4 = arith.constant 0 : index
    %3 = vector.load %arg3[%c0_3, %c0_4] : memref<3x128xf32, #tpu.memory_space<vmem>>, vector<3x128xf32>
    %4 = vector.extract_strided_slice %3 {offsets = [0, 0], sizes = [1, 128], strides = [1, 1]} : vector<3x128xf32> to vector<1x128xf32>
    %5 = vector.extract_strided_slice %3 {offsets = [1, 0], sizes = [1, 128], strides = [1, 1]} : vector<3x128xf32> to vector<1x128xf32>
    %6 = vector.extract_strided_slice %3 {offsets = [2, 0], sizes = [1, 128], strides = [1, 1]} : vector<3x128xf32> to vector<1x128xf32>
    %7 = vector.broadcast %4 : vector<1x128xf32> to vector<32x128xf32>
    %8 = arith.addf %2, %7 : vector<32x128xf32>
    %cst_5 = arith.constant dense<0.000000e+00> : vector<32xf32>
    %9 = vector.multi_reduction <add>, %8, %cst_5 [1] : vector<32x128xf32> to vector<32xf32>
    %10 = vector.shape_cast %9 : vector<32xf32> to vector<32x1xf32>
    %cst_6 = arith.constant 3.125000e-02 : f32
    %11 = vector.broadcast %cst_6 : f32 to vector<32x1xf32>
    %12 = arith.mulf %10, %11 : vector<32x1xf32>
    %13 = vector.broadcast %12 : vector<32x1xf32> to vector<32x128xf32>
    %14 = arith.subf %8, %13 : vector<32x128xf32>
    %15 = tpu.iota {dimensions = array<i32: 1>} : vector<1x128xi32>
    %c32_i32 = arith.constant 32 : i32
    %16 = vector.broadcast %c32_i32 : i32 to vector<1x128xi32>
    %17 = arith.cmpi slt, %15, %16 : vector<1x128xi32>
    %cst_7 = arith.constant 0.000000e+00 : f32
    %18 = vector.shape_cast %17 : vector<1x128xi1> to vector<1x128xi1>
    %19 = vector.broadcast %18 : vector<1x128xi1> to vector<32x128xi1>
    %20 = vector.broadcast %cst_7 : f32 to vector<32x128xf32>
    %21 = arith.select %19, %14, %20 : vector<32x128xi1>, vector<32x128xf32>
    %22 = arith.mulf %21, %21 : vector<32x128xf32>
    %cst_8 = arith.constant dense<0.000000e+00> : vector<32xf32>
    %23 = vector.multi_reduction <add>, %22, %cst_8 [1] : vector<32x128xf32> to vector<32xf32>
    %24 = vector.shape_cast %23 : vector<32xf32> to vector<32x1xf32>
    %cst_9 = arith.constant 3.125000e-02 : f32
    %25 = vector.broadcast %cst_9 : f32 to vector<32x1xf32>
    %26 = arith.mulf %24, %25 : vector<32x1xf32>
    %cst_10 = arith.constant 9.99999974E-6 : f32
    %27 = vector.broadcast %cst_10 : f32 to vector<32x1xf32>
    %28 = arith.addf %26, %27 : vector<32x1xf32>
    %29 = math.rsqrt %28 : vector<32x1xf32>
    %30 = vector.broadcast %5 : vector<1x128xf32> to vector<32x128xf32>
    %31 = vector.broadcast %29 : vector<32x1xf32> to vector<32x128xf32>
    %32 = arith.mulf %30, %31 : vector<32x128xf32>
    %33 = arith.mulf %21, %32 : vector<32x128xf32>
    %34 = vector.broadcast %6 : vector<1x128xf32> to vector<32x128xf32>
    %35 = arith.addf %33, %34 : vector<32x128xf32>
    %c0_11 = arith.constant 0 : index
    %c0_12 = arith.constant 0 : index
    %36 = vector.load %arg4[%c0_11, %c0_12] : memref<32x128xf32, #tpu.memory_space<vmem>>, vector<32x128xf32>
    tpu.vector_store %arg4[%c0_11, %c0_12], %35 {strides = array<i32>} : memref<32x128xf32, #tpu.memory_space<vmem>>, vector<32x128xf32>,
    return
  }
  func.func @transform_0(%arg0: i32) -> (i32, i32) {
    %c0_i32 = arith.constant 0 : i32
    %c0_i32_0 = arith.constant 0 : i32
    return %arg0, %c0_i32 : i32, i32
  }
  func.func @transform_1(%arg0: i32) -> (i32, i32) {
    %c0_i32 = arith.constant 0 : i32
    %c0_i32_0 = arith.constant 0 : i32
    %c0_i32_1 = arith.constant 0 : i32
    return %c0_i32, %c0_i32_0 : i32, i32
  }
  func.func @transform_2(%arg0: i32) -> (i32, i32) {
    %c0_i32 = arith.constant 0 : i32
    %c0_i32_0 = arith.constant 0 : i32
    %c0_i32_1 = arith.constant 0 : i32
    return %c0_i32, %c0_i32_0 : i32, i32
  }
  func.func @transform_3(%arg0: i32) -> (i32, i32) {
    %c0_i32 = arith.constant 0 : i32
    %c0_i32_0 = arith.constant 0 : i32
    return %arg0, %c0_i32 : i32, i32
  }
}

</mosaic_0001>

<llo_original>
// kernel: tpu_custom_call.1
$region0: #{tpu_custom_call.1}
  #allocation0 [shape = 'u32[]', space=smem, size = 0x4, offset = 0x4, fixed_abs, tag = 'smem constant byte address 0x4 - core index']
  #allocation1 [shape = 'u32[144,128]{1,0:T(1,128)}', space=vmem, size = 0x12000, scoped, tag = 'internal scratch']
  %s0 = inlined_call_operand.hbm [shape: f32[32,256], index: 0, kind: input, shape index: {}]
  %s1 = inlined_call_operand.hbm [shape: f32[256,128], index: 1, kind: input, shape index: {}]
  %s2 = inlined_call_operand.vmem [shape: f32[3,128], index: 2, kind: input, shape index: {}]
  %s3 = inlined_call_operand.hbm [shape: f32[32,128], index: 3, kind: output, shape index: {}]
  %s4 = sld [smem:[#allocation0]]
  $region30: #{tpu_custom_call.1} parent=0
    _
  %s6 = ssub.s32 1, %s4
  %s7 = scalar_select 0, %s6, %s4
  $region1: #{tpu_custom_call.1} parent=0
    #allocation2 [shape = 'u8[32768]{0}', space=vmem, size = 0x8000, scoped, tag = 'input window, operand 0, single buffered']
    #allocation3 [shape = 's32[1]{0}', space=sflag, size = 0x4, scoped, tag = 'scoped memory for tpu_custom_call.1']
    #allocation4 [shape = 's32[1]{0}', space=sflag, size = 0x4, scoped, tag = 'scoped memory for tpu_custom_call.1']
    #allocation5 [shape = 'u8[131072]{0}', space=vmem, size = 0x20000, scoped, tag = 'input window, operand 1, single buffered']
    #allocation6 [shape = 's32[1]{0}', space=sflag, size = 0x4, scoped, tag = 'scoped memory for tpu_custom_call.1']
    #allocation7 [shape = 'u8[16384]{0}', space=vmem, size = 0x4000, scoped, tag = 'output window, operand 0, single buffered']
    %8 = vsyncpa [#allocation3], 0
    %9 = vsyncpa [#allocation6], 0
    %10 = vsyncpa [#allocation4], 0
    // Predicated region
    $region2: #{tpu_custom_call.1} parent=1 // pred_check
      _
    $region3: #{tpu_custom_call.1} parent=1 // pred_check_branch
      %12 = sbr.rel (0) target = $region5
    $region4: #{tpu_custom_call.1} parent=1 // pred_region
      %s14 = ssub.s32 1024, 1024
      %15 = vsyncadd [#allocation3], %s14
      %s16 = sshll.u32 [#allocation2], 4
      %s17 = int_to_ptr.vmem [resolvable:$true] %s16
      %22 = dma.hbm_to_vmem [thread:$0]  %s0, 1024, %s17, [#allocation3], 256, 256, 16
    $region5: #{tpu_custom_call.1} parent=1 // pred_fallthru
      _
    // Predicated region
    $region6: #{tpu_custom_call.1} parent=1 // pred_check
      _
    $region7: #{tpu_custom_call.1} parent=1 // pred_check_branch
      %24 = sbr.rel (0) target = $region9
    $region8: #{tpu_custom_call.1} parent=1 // pred_region
      %s26 = ssub.s32 4096, 4096
      %27 = vsyncadd [#allocation6], %s26
      %s28 = sshll.u32 [#allocation5], 4
      %s29 = int_to_ptr.vmem [resolvable:$true] %s28
      %34 = dma.hbm_to_vmem [thread:$0]  %s1, 4096, %s29, [#allocation6], 128, 128, 8
    $region9: #{tpu_custom_call.1} parent=1 // pred_fallthru
      _
    // Predicated region
    $region10: #{tpu_custom_call.1} parent=1 // pred_check
      _
    $region11: #{tpu_custom_call.1} parent=1 // pred_check_branch
      %36 = sbr.rel (0) target = $region13
    $region12: #{tpu_custom_call.1} parent=1 // pred_region
      _
    $region13: #{tpu_custom_call.1} parent=1 // pred_fallthru
      _
    // Predicated region
    $region14: #{tpu_custom_call.1} parent=1 // pred_check
      _
    $region15: #{tpu_custom_call.1} parent=1 // pred_check_branch
      %38 = sbr.rel (0) target = $region17
    $region16: #{tpu_custom_call.1} parent=1 // pred_region
      %39 = dma.done [#allocation3], 1024
    $region17: #{tpu_custom_call.1} parent=1 // pred_fallthru
      _
    // Predicated region
    $region18: #{tpu_custom_call.1} parent=1 // pred_check
      _
    $region19: #{tpu_custom_call.1} parent=1 // pred_check_branch
      %41 = sbr.rel (0) target = $region21
    $region20: #{tpu_custom_call.1} parent=1 // pred_region
      %42 = dma.done [#allocation6], 4096
    $region21: #{tpu_custom_call.1} parent=1 // pred_fallthru
      _
    %v43 = vld [vmem:[#allocation2] sm:$0xff]
    %v44 = vld [vmem:[#allocation2 + $0x8] sm:$0xff]
    %v45 = vld [vmem:[#allocation2 + $0x10] sm:$0xff]
    %v46 = vld [vmem:[#allocation2 + $0x18] sm:$0xff]
    %v47 = vld [vmem:[#allocation2 + $0x20] sm:$0xff]
    %v48 = vld [vmem:[#allocation2 + $0x28] sm:$0xff]
    %v49 = vld [vmem:[#allocation2 + $0x30] sm:$0xff]
    %v50 = vld [vmem:[#allocation2 + $0x38] sm:$0xff]
    %v51 = vld [vmem:[#allocation5] sm:$0xff]
    %v52 = vld [vmem:[#allocation5 + $0x8] sm:$0xff]
    %v53 = vld [vmem:[#allocation5 + $0x10] sm:$0xff]
    %v54 = vld [vmem:[#allocation5 + $0x18] sm:$0xff]
    %v55 = vld [vmem:[#allocation5 + $0x20] sm:$0xff]
    %v56 = vld [vmem:[#allocation5 + $0x28] sm:$0xff]
    %v57 = vld [vmem:[#allocation5 + $0x30] sm:$0xff]
    %v58 = vld [vmem:[#allocation5 + $0x38] sm:$0xff]
    %v59 = vld [vmem:[#allocation5 + $0x40] sm:$0xff]
    %v60 = vld [vmem:[#allocation5 + $0x48] sm:$0xff]
    %v61 = vld [vmem:[#allocation5 + $0x50] sm:$0xff]
    %v62 = vld [vmem:[#allocation5 + $0x58] sm:$0xff]
    %v63 = vld [vmem:[#allocation5 + $0x60] sm:$0xff]
    %v64 = vld [vmem:[#allocation5 + $0x68] sm:$0xff]
    %v65 = vld [vmem:[#allocation5 + $0x70] sm:$0xff]
    %v66 = vld [vmem:[#allocation5 + $0x78] sm:$0xff]
    %v67 = vld [vmem:[#allocation5 + $0x80] sm:$0xff]
    %v68 = vld [vmem:[#allocation5 + $0x88] sm:$0xff]
    %v69 = vld [vmem:[#allocation5 + $0x90] sm:$0xff]
    %v70 = vld [vmem:[#allocation5 + $0x98] sm:$0xff]
    %v71 = vld [vmem:[#allocation5 + $0xa0] sm:$0xff]
    %v72 = vld [vmem:[#allocation5 + $0xa8] sm:$0xff]
    %v73 = vld [vmem:[#allocation5 + $0xb0] sm:$0xff]
    %v74 = vld [vmem:[#allocation5 + $0xb8] sm:$0xff]
    %v75 = vld [vmem:[#allocation5 + $0xc0] sm:$0xff]
    %v76 = vld [vmem:[#allocation5 + $0xc8] sm:$0xff]
    %v77 = vld [vmem:[#allocation5 + $0xd0] sm:$0xff]
    %v78 = vld [vmem:[#allocation5 + $0xd8] sm:$0xff]
    %v79 = vld [vmem:[#allocation5 + $0xe0] sm:$0xff]
    %v80 = vld [vmem:[#allocation5 + $0xe8] sm:$0xff]
    %v81 = vld [vmem:[#allocation5 + $0xf0] sm:$0xff]
    %v82 = vld [vmem:[#allocation5 + $0xf8] sm:$0xff]
    %v83 = vld [vmem:[%s2] sm:$0x7]
    %v84 = vlaneseq
    %v85 = vshrl.u32 %v84, 7
    %v86 = vsub.s32 0, %v85
    %v87 = vrot.slane %v83, %v86
    %88 = vmatprep.subr.mxu0 0.0
    %89 = vmatpush1.msra.mxu0 %v51
    %90 = vmatprep.subr.mxu0 0.0
    %91 = vmatpush1.msra.mxu0 %v52
    %92 = vmatprep.subr.mxu0 0.0
    %93 = vmatpush1.msra.mxu0 %v53
    %94 = vmatprep.subr.mxu0 0.0
    %95 = vmatpush1.msra.mxu0 %v54
    %96 = vmatprep.subr.mxu0 0.0
    %97 = vmatpush1.msra.mxu0 %v55
    %98 = vmatprep.subr.mxu0 0.0
    %99 = vmatpush1.msra.mxu0 %v56
    %100 = vmatprep.subr.mxu0 0.0
    %101 = vmatpush1.msra.mxu0 %v57
    %102 = vmatprep.subr.mxu0 0.0
    %103 = vmatpush1.msra.mxu0 %v58
    %104 = vmatprep.subr.mxu0 0.0
    %105 = vmatpush1.msra.mxu0 %v59
    %106 = vmatprep.subr.mxu0 0.0
    %107 = vmatpush1.msra.mxu0 %v60
    %108 = vmatprep.subr.mxu0 0.0
    %109 = vmatpush1.msra.mxu0 %v61
    %110 = vmatprep.subr.mxu0 0.0
    %111 = vmatpush1.msra.mxu0 %v62
    %112 = vmatprep.subr.mxu0 0.0
    %113 = vmatpush1.msra.mxu0 %v63
    %114 = vmatprep.subr.mxu0 0.0
    %115 = vmatpush1.msra.mxu0 %v64
    %116 = vmatprep.subr.mxu0 0.0
    %117 = vmatpush1.msra.mxu0 %v65
    %118 = vmatprep.subr.mxu0 0.0
    %119 = vmatpush1.msra.mxu0 %v66
    %120 = vmatprep.subr.mxu0 0.0
    %121 = vmatpush1.msra.mxu0 %v67
    %122 = vmatprep.subr.mxu0 0.0
    %123 = vmatpush1.msra.mxu0 %v68
    %124 = vmatprep.subr.mxu0 0.0
    %125 = vmatpush1.msra.mxu0 %v69
    %126 = vmatprep.subr.mxu0 0.0
    %127 = vmatpush1.msra.mxu0 %v70
    %128 = vmatprep.subr.mxu0 0.0
    %129 = vmatpush1.msra.mxu0 %v71
    %130 = vmatprep.subr.mxu0 0.0
    %131 = vmatpush1.msra.mxu0 %v72
    %132 = vmatprep.subr.mxu0 0.0
    %133 = vmatpush1.msra.mxu0 %v73
    %134 = vmatprep.subr.mxu0 0.0
    %135 = vmatpush1.msra.mxu0 %v74
    %136 = vmatprep.subr.mxu0 0.0
    %137 = vmatpush1.msra.mxu0 %v75
    %138 = vmatprep.subr.mxu0 0.0
    %139 = vmatpush1.msra.mxu0 %v76
    %140 = vmatprep.subr.mxu0 0.0
    %141 = vmatpush1.msra.mxu0 %v77
    %142 = vmatprep.subr.mxu0 0.0
    %143 = vmatpush1.msra.mxu0 %v78
    %144 = vmatprep.subr.mxu0 0.0
    %145 = vmatpush1.msra.mxu0 %v79
    %146 = vmatprep.subr.mxu0 0.0
    %147 = vmatpush1.msra.mxu0 %v80
    %148 = vmatprep.subr.mxu0 0.0
    %149 = vmatpush1.msra.mxu0 %v81
    %150 = vmatprep.subr.mxu0 0.0
    %151 = vmatpush1.msra.mxu0 %v82
    %152 = vmatprep.mubr.f32.mxu0 %v44
    %153 = vmatmul.mubr.f32.gmra.mrb[0].mxu0 %v43
    %v154 = vpop.f32.mrb[0].mxu0
    %v155 = vadd.f32 %v87, %v154
    %v156 = vpop.f32.mrb[0].mxu0
    %157 = vmatprep.mubr.f32.mxu0 %v46
    %158 = vmatmul.mubr.f32.gmra.mrb[0].mxu0 %v45
    %v159 = vpop.f32.mrb[0].mxu0
    %v160 = vadd.f32 %v87, %v159
    %v161 = vpop.f32.mrb[0].mxu0
    %162 = vmatprep.mubr.f32.mxu0 %v48
    %163 = vmatmul.mubr.f32.gmra.mrb[0].mxu0 %v47
    %v164 = vpop.f32.mrb[0].mxu0
    %v165 = vadd.f32 %v87, %v164
    %v166 = vpop.f32.mrb[0].mxu0
    %167 = vmatprep.mubr.f32.mxu0 %v50
    %168 = vmatmul.mubr.f32.gmra.mrb[0].mxu0 %v49
    %v169 = vpop.f32.mrb[0].mxu0
    %v170 = vadd.f32 %v87, %v169
    %v171 = vpop.f32.mrb[0].mxu0
    %172 = vdwg.mxu0
    %173 = vadd.xlane.f32.xlu0 %v155
    %v174 = vpop.xlane.xlu0 %173
    %175 = vadd.xlane.f32.xlu0 %v160
    %v176 = vpop.xlane.xlu0 %175
    %177 = vadd.xlane.f32.xlu0 %v165
    %v178 = vpop.xlane.xlu0 %177
    %179 = vadd.xlane.f32.xlu0 %v170
    %v180 = vpop.xlane.xlu0 %179
    %v181 = vmul.f32 %v174, 0.03125
    %v182 = vmul.f32 %v176, 0.03125
    %v183 = vmul.f32 %v178, 0.03125
    %v184 = vmul.f32 %v180, 0.03125
    %v185 = vsub.f32 %v155, %v181
    %v186 = vsub.f32 %v160, %v182
    %v187 = vsub.f32 %v165, %v183
    %v188 = vsub.f32 %v170, %v184
    %v189 = vlaneseq
    %v190 = vand.u32 %v189, 127
    %vm191 = vcmp.lt.s32.totalorder %v190, 32
    %v192 = vsel %vm191, 1, 0
    %vm193 = vcmp.eq.s32.totalorder %v192, 1
    %v194 = vsel %vm193, %v185, 0.0
    %v195 = vsel %vm193, %v186, 0.0
    %v196 = vsel %vm193, %v187, 0.0
    %v197 = vsel %vm193, %v188, 0.0
    %v198 = vmul.f32 %v194, %v194
    %v199 = vmul.f32 %v195, %v195
    %v200 = vmul.f32 %v196, %v196
    %v201 = vmul.f32 %v197, %v197
    %202 = vadd.xlane.f32.xlu0 %v198
    %v203 = vpop.xlane.xlu0 %202
    %204 = vadd.xlane.f32.xlu0 %v199
    %v205 = vpop.xlane.xlu0 %204
    %206 = vadd.xlane.f32.xlu0 %v200
    %v207 = vpop.xlane.xlu0 %206
    %208 = vadd.xlane.f32.xlu0 %v201
    %v209 = vpop.xlane.xlu0 %208
    %v210 = vmul.f32 %v203, 0.03125
    %v211 = vmul.f32 %v205, 0.03125
    %v212 = vmul.f32 %v207, 0.03125
    %v213 = vmul.f32 %v209, 0.03125
    %v214 = vadd.f32 %v210, 1e-05
    %v215 = vadd.f32 %v211, 1e-05
    %v216 = vadd.f32 %v212, 1e-05
    %v217 = vadd.f32 %v213, 1e-05
    %v218 = vrsqrt.pop %v214
    %v219 = vrsqrt.pop %v215
    %v220 = vrsqrt.pop %v216
    %v221 = vrsqrt.pop %v217
    %v222 = vlaneseq
    %v223 = vshrl.u32 %v222, 7
    %v224 = vsub.s32 1, %v223
    %v225 = vrot.slane %v83, %v224
    %v226 = vmul.f32 %v225, %v218
    %v227 = vmul.f32 %v225, %v219
    %v228 = vmul.f32 %v225, %v220
    %v229 = vmul.f32 %v225, %v221
    %v230 = vmul.f32 %v194, %v226
    %v231 = vmul.f32 %v195, %v227
    %v232 = vmul.f32 %v196, %v228
    %v233 = vmul.f32 %v197, %v229
    %v234 = vlaneseq
    %v235 = vshrl.u32 %v234, 7
    %v236 = vsub.s32 2, %v235
    %v237 = vrot.slane %v83, %v236
    %v238 = vadd.f32 %v230, %v237
    %v239 = vadd.f32 %v231, %v237
    %v240 = vadd.f32 %v232, %v237
    %v241 = vadd.f32 %v233, %v237
    %242 = vst [vmem:[#allocation7] sm:$0xff] %v238
    %243 = vst [vmem:[#allocation7 + $0x8] sm:$0xff] %v239
    %244 = vst [vmem:[#allocation7 + $0x10] sm:$0xff] %v240
    %245 = vst [vmem:[#allocation7 + $0x18] sm:$0xff] %v241
    // Predicated region
    $region22: #{tpu_custom_call.1} parent=1 // pred_check
      _
    $region23: #{tpu_custom_call.1} parent=1 // pred_check_branch
      %247 = sbr.rel (0) target = $region25
    $region24: #{tpu_custom_call.1} parent=1 // pred_region
      %s249 = ssub.s32 512, 512
      %250 = vsyncadd [#allocation4], %s249
      %s251 = sshll.u32 [#allocation7], 4
      %s252 = int_to_ptr.vmem [resolvable:$true] %s251
      %257 = dma.vmem_to_hbm [thread:$0]  %s252, 512, %s3, [#allocation4], 128, 128, 8
    $region25: #{tpu_custom_call.1} parent=1 // pred_fallthru
      _
    // Predicated region
    $region26: #{tpu_custom_call.1} parent=1 // pred_check
      _
    $region27: #{tpu_custom_call.1} parent=1 // pred_check_branch
      %259 = sbr.rel (0) target = $region29
    $region28: #{tpu_custom_call.1} parent=1 // pred_region
      %260 = dma.done [#allocation4], 512
    $region29: #{tpu_custom_call.1} parent=1 // pred_fallthru
      _
    %261 = vsyncpa [#allocation3], 1
    %262 = vsyncpa [#allocation6], 1
    %263 = vsyncpa [#allocation4], 1

</llo_original>
